<compile_context>
chip_gen: v7x
topology: tpu7x:2x2x1
jax: 0.10.0
libtpu: 0.0.40
codegen_flags: <defaults>
</compile_context>

<pallas_src>
import functools

import jax
import jax.numpy as jnp
from jax.experimental import pallas as pl
from jax.experimental.pallas import tpu as pltpu


def _round_up(a, m):
    return (a + m - 1) // m * m


def _tpu_info():
    """(num_tensorcores, physical VMEM bytes) with conservative fallbacks."""
    vmem = 64 << 20                      # assume the tightest (v7x) budget
    try:
        vmem = int(pltpu.get_tpu_info().vmem_capacity_bytes)
    except Exception:
        pass
    # v7x: 64 MiB/TC and 2 TensorCores per chip; v5e/v6e: 128 MiB, 1 TC.
    n_tc = 2 if vmem <= (64 << 20) else 1
    return n_tc, vmem


def _choose_tiles(b, c, k, hin, win, itemsize, n_tc, target_tile_bytes=2 << 20):
    """Pick (cblk, hblk): channel / input-row block sizes.

    * per-step input tile capped near the ~1-4 MiB HBM-roofline plateau
      (huge tiles defeat double-buffer overlap and inflate scoped VMEM);
    * >= 4 grid steps per TensorCore whenever the problem allows it;
    * hblk is the full Hin or k*(multiple of the sublane granule) so both the
      input block and the k-times-smaller output block stay tile-aligned.
    """
    sub = 8 * max(1, 4 // max(1, itemsize))     # 8 (f32) / 16 (bf16) / 32 (i8)
    hout = hin // k
    plane_bytes = hin * win * itemsize

    def divisors(n):
        return [d for d in range(1, n + 1) if n % d == 0]

    # row-block candidates: full plane, or k*(multiple of `sub`) rows dividing Hin
    h_cands = sorted({hin} | {k * d for d in divisors(hout) if d % sub == 0})

    def steps(cb, hb):
        return b * (c // cb) * (hin // hb)

    # 1) largest channel block whose full-plane tile fits the target
    c_fit = [d for d in divisors(c) if d * plane_bytes <= target_tile_bytes]
    cblk = max(c_fit) if c_fit else 1
    hblk = hin

    # 2) a single plane is too big -> tile rows instead (cblk stays 1)
    if cblk * plane_bytes > target_tile_bytes:
        h_fit = [hb for hb in h_cands if hb * win * itemsize <= target_tile_bytes]
        if h_fit:
            hblk = max(h_fit)

    # 3) enough grid steps for pipelining (and both v7x TensorCores)
    min_steps = 4 * n_tc
    while steps(cblk, hblk) < min_steps and cblk > 1:
        cblk = max(d for d in divisors(c) if d < cblk)
    if steps(cblk, hblk) < min_steps:
        h_more = [hb for hb in h_cands if steps(cblk, hb) >= min_steps]
        if h_more:
            hblk = max(h_more)

    return cblk, hblk


def _pixel_unshuffle_kernel(x_ref, o_ref, *, k, hout, wout):
    # x_ref: (cblk, k*hout, k*wout) input tile (channels, in-rows, in-cols)
    # o_ref: (cblk, k*k, hout, wout) output tile in (c, ky*k+kx, i, j) order
    cblk = x_ref.shape[0]
    for ky in range(k):                                   # unrolled, k is tiny
        # Sublane-strided read of input rows ky, ky+k, ky+2k, ...  The HBM->VMEM
        # DMA stays fully contiguous; only this in-VMEM load is strided.
        slab = x_ref[:, pl.ds(ky, hout, stride=k), :]      # (cblk, hout, k*wout)
        # One lane de-interleave pass handles every kx of this ky:
        #   (cblk, hout, wout, k) -> (cblk, k, hout, wout)
        slab = jnp.transpose(slab.reshape(cblk, hout, wout, k), (0, 3, 1, 2))
        # Contiguous row-group of the (c, ky, kx) ordering; layout already
        # matches the destination, so no merge relayout before the store.
        o_ref[:, ky * k:(ky + 1) * k, :, :] = slab


def pixel_unshuffle(x, downscale_factor, *, cblk=None, hblk=None):
    k = int(downscale_factor)
    b, c, hin, win = x.shape
    assert hin % k == 0 and win % k == 0, "spatial dims must be divisible by k"
    if k == 1:
        return x
    h_out, w_out = hin // k, win // k

    itemsize = jnp.dtype(x.dtype).itemsize
    n_tc, phys_vmem = _tpu_info()
    auto_cblk, auto_hblk = _choose_tiles(b, c, k, hin, win, itemsize, n_tc)
    cblk = auto_cblk if cblk is None else cblk
    hblk = auto_hblk if hblk is None else hblk
    assert c % cblk == 0 and hin % hblk == 0 and hblk % k == 0
    hout_blk = hblk // k

    # VMEM budget: double-buffered in+out tiles (padded to the (sublane, 128)
    # granule) plus room for the per-ky relayout temporaries; capped well below
    # physical VMEM (tighter on v7x's 64 MiB/TC).
    sub = 8 * max(1, 4 // max(1, itemsize))
    in_vmem = cblk * _round_up(hblk, sub) * _round_up(win, 128) * itemsize
    out_vmem = (cblk * k * k * _round_up(hout_blk, sub)
                * _round_up(w_out, 128) * itemsize)
    vmem_need = 2 * (in_vmem + out_vmem) + 2 * max(in_vmem, out_vmem) + (4 << 20)
    vmem_cap = (44 << 20) if phys_vmem <= (64 << 20) else (100 << 20)
    vmem_limit = int(max(32 << 20, min(vmem_need, vmem_cap)))

    kernel = functools.partial(_pixel_unshuffle_kernel,
                               k=k, hout=hout_blk, wout=w_out)

    out5 = pl.pallas_call(
        kernel,
        out_shape=jax.ShapeDtypeStruct((b, c, k * k, h_out, w_out), x.dtype),
        grid=(b, c // cblk, hin // hblk),
        in_specs=[
            # cblk channels x hblk input rows x full width per grid step.
            pl.BlockSpec((None, cblk, hblk, win),
                         lambda bi, ci, hi: (bi, ci, hi, 0)),
        ],
        out_specs=pl.BlockSpec(
            # matching cblk channels x all k*k phases x hblk/k output rows.
            (None, cblk, k * k, hout_blk, w_out),
            lambda bi, ci, hi: (bi, ci, 0, hi, 0)),
        compiler_params=pltpu.CompilerParams(
            dimension_semantics=("parallel", "parallel", "parallel"),
            vmem_limit_bytes=vmem_limit,
        ),
        cost_estimate=pl.CostEstimate(
            flops=0, transcendentals=0,
            bytes_accessed=2 * b * c * hin * win * itemsize),
    )(x)

    # free reshape of the contiguous (B, C, k*k, H, W) result back to NCHW
    return out5.reshape(b, c * k * k, h_out, w_out)


def _reference_pixel_unshuffle(x, k):
    # pure-JAX reference with identical channel ordering
    b, c, hin, win = x.shape
    h, w = hin // k, win // k
    y = x.reshape(b, c, h, k, w, k)
    y = jnp.transpose(y, (0, 1, 3, 5, 2, 4))  # (B, C, k_y, k_x, H, W)
    return y.reshape(b, c * k * k, h, w)


if __name__ == "__main__":
    key = jax.random.PRNGKey(0)
    B, C, H, W = 2, 4, 16, 16   # input: (B, C, k*h, k*w) with k=2
    k = 2
    x = jax.random.normal(key, (B, C, H, W), dtype=jnp.float32)

    out = jax.block_until_ready(pixel_unshuffle(x, k))
    ref = _reference_pixel_unshuffle(x, k)

    assert out.shape == (B, k * k * C, H // k, W // k), out.shape
    assert out.dtype == x.dtype
    assert jnp.allclose(out, ref), "Pallas result mismatch vs reference"

    print("KERNEL_OK")
</pallas_src>

<mosaic_0001>
module attributes {stable_mosaic.version = 11 : i64} {
  func.func @_pixel_unshuffle_kernel(%arg0: i32, %arg1: i32, %arg2: i32, %arg3: memref<1x1x16x16xf32, #tpu.memory_space<vmem>>, %arg4: memref<1x1x4x8x8xf32, #tpu.memory_space<vmem>>) attributes {dimension_semantics = [#tpu.dimension_semantics<parallel>, #tpu.dimension_semantics<parallel>, #tpu.dimension_semantics<parallel>], iteration_bounds = array<i64: 2, 4, 1>, scalar_prefetch = 0 : i64, scratch_operands = 0 : i64, tpu.core_type = #tpu.core_type<tc>, window_params = [{transform_indices = @transform_0, window_bounds = array<i64: 1, 1, 16, 16>}, {transform_indices = @transform_1, window_bounds = array<i64: 1, 1, 4, 8, 8>}]} {
    %c0 = arith.constant 0 : index
    %c0_0 = arith.constant 0 : index
    %c0_1 = arith.constant 0 : index
    %c0_2 = arith.constant 0 : index
    %0 = tpu.strided_load %arg3[%c0, %c0_0, %c0_1, %c0_2] {strides = array<i32: 1, 1, 2, 1>} : memref<1x1x16x16xf32, #tpu.memory_space<vmem>>, vector<1x1x8x16xf32>
    %1 = vector.shape_cast %0 : vector<1x1x8x16xf32> to vector<1x8x16xf32>
    %2 = vector.shape_cast %1 : vector<1x8x16xf32> to vector<1x8x8x2xf32>
    %3 = tpu.transpose %2, [0, 3, 1, 2] : vector<1x8x8x2xf32> -> vector<1x2x8x8xf32>
    %c0_3 = arith.constant 0 : index
    %c0_4 = arith.constant 0 : index
    %c0_5 = arith.constant 0 : index
    %c0_6 = arith.constant 0 : index
    %c0_7 = arith.constant 0 : index
    %4 = vector.load %arg4[%c0_3, %c0_4, %c0_5, %c0_6, %c0_7] : memref<1x1x4x8x8xf32, #tpu.memory_space<vmem>>, vector<1x1x2x8x8xf32>
    %5 = vector.shape_cast %4 : vector<1x1x2x8x8xf32> to vector<1x2x8x8xf32>
    %6 = vector.shape_cast %3 : vector<1x2x8x8xf32> to vector<1x1x2x8x8xf32>
    tpu.vector_store %arg4[%c0_3, %c0_4, %c0_5, %c0_6, %c0_7], %6 {strides = array<i32>} : memref<1x1x4x8x8xf32, #tpu.memory_space<vmem>>, vector<1x1x2x8x8xf32>,
    %c0_8 = arith.constant 0 : index
    %c0_9 = arith.constant 0 : index
    %c1 = arith.constant 1 : index
    %c0_10 = arith.constant 0 : index
    %7 = tpu.strided_load %arg3[%c0_8, %c0_9, %c1, %c0_10] {strides = array<i32: 1, 1, 2, 1>} : memref<1x1x16x16xf32, #tpu.memory_space<vmem>>, vector<1x1x8x16xf32>
    %8 = vector.shape_cast %7 : vector<1x1x8x16xf32> to vector<1x8x16xf32>
    %9 = vector.shape_cast %8 : vector<1x8x16xf32> to vector<1x8x8x2xf32>
    %10 = tpu.transpose %9, [0, 3, 1, 2] : vector<1x8x8x2xf32> -> vector<1x2x8x8xf32>
    %c0_11 = arith.constant 0 : index
    %c0_12 = arith.constant 0 : index
    %c2 = arith.constant 2 : index
    %c0_13 = arith.constant 0 : index
    %c0_14 = arith.constant 0 : index
    %11 = vector.load %arg4[%c0_11, %c0_12, %c2, %c0_13, %c0_14] : memref<1x1x4x8x8xf32, #tpu.memory_space<vmem>>, vector<1x1x2x8x8xf32>
    %12 = vector.shape_cast %11 : vector<1x1x2x8x8xf32> to vector<1x2x8x8xf32>
    %13 = vector.shape_cast %10 : vector<1x2x8x8xf32> to vector<1x1x2x8x8xf32>
    tpu.vector_store %arg4[%c0_11, %c0_12, %c2, %c0_13, %c0_14], %13 {strides = array<i32>} : memref<1x1x4x8x8xf32, #tpu.memory_space<vmem>>, vector<1x1x2x8x8xf32>,
    return
  }
  func.func @transform_0(%arg0: i32, %arg1: i32, %arg2: i32) -> (i32, i32, i32, i32) {
    %c0_i32 = arith.constant 0 : i32
    %c0_i32_0 = arith.constant 0 : i32
    return %arg0, %arg1, %arg2, %c0_i32 : i32, i32, i32, i32
  }
  func.func @transform_1(%arg0: i32, %arg1: i32, %arg2: i32) -> (i32, i32, i32, i32, i32) {
    %c0_i32 = arith.constant 0 : i32
    %c0_i32_0 = arith.constant 0 : i32
    %c0_i32_1 = arith.constant 0 : i32
    return %arg0, %arg1, %c0_i32, %arg2, %c0_i32_0 : i32, i32, i32, i32, i32
  }
}

</mosaic_0001>

<llo_original>
// kernel: tpu_custom_call.1
$region0: #{tpu_custom_call.1}
  #allocation0 [shape = 'u32[]', space=smem, size = 0x4, offset = 0x4, fixed_abs, tag = 'smem constant byte address 0x4 - core index']
  #allocation1 [shape = 'u32[144,128]{1,0:T(1,128)}', space=vmem, size = 0x12000, scoped, tag = 'internal scratch']
  %s0 = inlined_call_operand.hbm [shape: f32[2,4,16,16], index: 0, kind: input, shape index: {}]
  %s1 = inlined_call_operand.hbm [shape: f32[2,4,4,8,8], index: 1, kind: output, shape index: {}]
  %s2 = sld [smem:[#allocation0]]
  $region41: #{tpu_custom_call.1} parent=0
    _
  %s4 = ssub.s32 1, %s2
  %s5 = scalar_select 0, %s4, %s2
  $region1: #{tpu_custom_call.1} parent=0
    #allocation2 [shape = 'u8[16384]{0}', space=vmem, size = 0x4000, scoped, tag = 'input window, operand 0']
    #allocation3 [shape = 's32[2]{0}', space=sflag, size = 0x8, scoped, tag = 'scoped memory for tpu_custom_call.1']
    #allocation4 [shape = 's32[2]{0}', space=sflag, size = 0x8, scoped, tag = 'scoped memory for tpu_custom_call.1']
    #allocation5 [shape = 'u8[32768]{0}', space=vmem, size = 0x8000, scoped, tag = 'output window, operand 0']
    %6 = vsyncpa [#allocation3], 0
    %s7 = scalar_lea.sflag [#allocation3], 1
    %8 = vsyncpa %s7, 0
    %9 = vsyncpa [#allocation4], 0
    %s10 = scalar_lea.sflag [#allocation4], 1
    %11 = vsyncpa %s10, 0
    loop: start=0, step=1, limit=10
    $region2: #{tpu_custom_call.1} parent=1 // loop_pre_header
      _
    $region3: #{tpu_custom_call.1} parent=1 // loop_header
      %s13 = sphi 0, %s17
      %p14 = scmp.ge.s32.totalorder %s13, 10
      %s20 = sphi 0, %s39
      %s21 = sphi 0, %s35
      %s22 = sphi 0, %s31
      %s23 = sphi 0, %s20
      %s24 = sphi 0, %s21
      %s25 = sphi 0, %s22
      %s26 = sphi 0, %s23
      %s27 = sphi 0, %s24
      %s28 = sphi 0, %s25
      %s46 = sphi 0, %s48
      %s49 = sphi 0, %s46
      %s50 = sphi 0, %s49
      %s66 = sphi 0, %s50
      %s76 = sphi 0, %s78
      %s79 = sphi 0, %s76
      %s80 = sphi 0, %s79
      %s96 = sphi 0, %s80
    $region4: #{tpu_custom_call.1} parent=1 // loop_header_branch
      %16 = sbr.rel (%p14) target = $region8
    $region5: #{tpu_custom_call.1} parent=1 // loop_body
      %s18 = ssub.s32 %s13, 1
      %s19 = ssub.s32 %s13, 2
      %s29 = sadd.s32 1, %s22
      %p30 = scmp.ge.s32.totalorder %s29, 1
      %s31 = scalar_select %p30, 0, %s29
      %s32 = sadd.s32 1, %s21
      %s33 = scalar_select %p30, %s32, %s21
      %p34 = scmp.ge.s32.totalorder %s33, 4
      %s35 = scalar_select %p34, 0, %s33
      %s36 = sadd.s32 1, %s20
      %s37 = scalar_select %p34, %s36, %s20
      %p38 = scmp.ge.s32.totalorder %s37, 2
      %s39 = scalar_select %p38, 0, %s37
      %s40 = ssub.s32 %s20, %s39
      %s41 = ssub.s32 %s21, %s35
      %s42 = sor.u32 %s40, %s41
      %s43 = ssub.s32 %s22, %s31
      %s44 = sor.u32 %s42, %s43
      %p45 = scmp.eq.s32.totalorder %s44, 0
      %s47 = sadd.s32 %s46, 1
      %s48 = scalar_select %p45, %s46, %s47
      %p51 = pneg %p45
      %p52 = scmp.eq.s32.totalorder %s13, 7
      %p53 = por %p51, %p52
      %p54 = scmp.ne.s32.totalorder %s46, %s49
      %p55 = scmp.eq.s32.totalorder %s13, 0
      %p56 = por %p54, %p55
      %p57 = scmp.ne.s32.totalorder %s46, %s49
      %p58 = scmp.eq.s32.totalorder %s18, 7
      %p59 = por %p57, %p58
      %p60 = scmp.ne.s32.totalorder %s49, %s50
      %p61 = scmp.eq.s32.totalorder %s18, 0
      %p62 = por %p60, %p61
      %p63 = scmp.ne.s32.totalorder %s49, %s50
      %p64 = scmp.eq.s32.totalorder %s19, 7
      %p65 = por %p63, %p64
      %p67 = scmp.ne.s32.totalorder %s50, %s66
      %p68 = scmp.eq.s32.totalorder %s19, 0
      %p69 = por %p67, %p68
      %s70 = ssub.s32 %s20, %s39
      %s71 = ssub.s32 %s21, %s35
      %s72 = sor.u32 %s70, %s71
      %s73 = ssub.s32 %s22, %s31
      %s74 = sor.u32 %s72, %s73
      %p75 = scmp.eq.s32.totalorder %s74, 0
      %s77 = sadd.s32 %s76, 1
      %s78 = scalar_select %p75, %s76, %s77
      %p81 = pneg %p75
      %p82 = scmp.eq.s32.totalorder %s13, 7
      %p83 = por %p81, %p82
      %p84 = scmp.ne.s32.totalorder %s76, %s79
      %p85 = scmp.eq.s32.totalorder %s13, 0
      %p86 = por %p84, %p85
      %p87 = scmp.ne.s32.totalorder %s76, %s79
      %p88 = scmp.eq.s32.totalorder %s18, 7
      %p89 = por %p87, %p88
      %p90 = scmp.ne.s32.totalorder %s79, %s80
      %p91 = scmp.eq.s32.totalorder %s18, 0
      %p92 = por %p90, %p91
      %p93 = scmp.ne.s32.totalorder %s79, %s80
      %p94 = scmp.eq.s32.totalorder %s19, 7
      %p95 = por %p93, %p94
      %p97 = scmp.ne.s32.totalorder %s80, %s96
      %p98 = scmp.eq.s32.totalorder %s19, 0
      %p99 = por %p97, %p98
      %p100 = scmp.le.s32.totalorder 1, %s13
      %p101 = scmp.lt.s32.totalorder %s13, 9
      %p102 = pnand %p100, %p101
      %p103 = pneg %p102
      // Predicated region
      $region9: #{tpu_custom_call.1} parent=5 // pred_check
        _
      $region10: #{tpu_custom_call.1} parent=5 // pred_check_branch
        %105 = sbr.rel (%p102) target = $region12
      $region11: #{tpu_custom_call.1} parent=5 // pred_region
        %s106 = ssub.s32 %s13, 1
      $region12: #{tpu_custom_call.1} parent=5 // pred_fallthru
        _
      %p107 = scmp.lt.s32.totalorder %s13, 8
      // Predicated region
      $region13: #{tpu_custom_call.1} parent=5 // pred_check
        %p108 = pneg %p107
      $region14: #{tpu_custom_call.1} parent=5 // pred_check_branch
        %110 = sbr.rel (%p108) target = $region16
      $region15: #{tpu_custom_call.1} parent=5 // pred_region
        // Predicated region
        $region17: #{tpu_custom_call.1} parent=15 // pred_check
          %p111 = pneg %p56
        $region18: #{tpu_custom_call.1} parent=15 // pred_check_branch
          %113 = sbr.rel (%p111) target = $region20
        $region19: #{tpu_custom_call.1} parent=15 // pred_region
          %s114 = sand.u32 %s46, 1
          %s115 = scalar_lea.sflag [#allocation3], %s114
          %s116 = sand.u32 %s46, 1
          %s117 = smul.addr %s116, 16
          %s118 = scalar_lea.vmem [#allocation2], %s117
          %s119 = smul.u32 2, %s22
          %s121 = ssub.s32 256, 256
          %122 = vsyncadd %s115, %s121
          %s123 = smul.addr %s21, 2
          %s124 = sadd.s32 %s119, %s123
          %s125 = smul.addr %s20, 8
          %s126 = sadd.s32 %s124, %s125
          %s127 = smul.addr %s126, 128
          %s128 = scalar_lea.hbm %s0, %s127
          %s129 = sshll.u32 %s118, 4
          %s130 = int_to_ptr.vmem [resolvable:$true] %s129
          %135 = dma.hbm_to_vmem [thread:$0]  %s128, 256, %s130, %s115, 128, 128, 8
        $region20: #{tpu_custom_call.1} parent=15 // pred_fallthru
          _
      $region16: #{tpu_custom_call.1} parent=5 // pred_fallthru
        _
      %p136 = scmp.le.s32.totalorder 1, %s13
      %p137 = scmp.lt.s32.totalorder %s13, 9
      %p138 = pnand %p136, %p137
      %p139 = pneg %p138
      // Predicated region
      $region21: #{tpu_custom_call.1} parent=5 // pred_check
        _
      $region22: #{tpu_custom_call.1} parent=5 // pred_check_branch
        %141 = sbr.rel (%p138) target = $region24
      $region23: #{tpu_custom_call.1} parent=5 // pred_region
        %s142 = ssub.s32 %s13, 1
        %s143 = sand.u32 %s49, 1
        %s144 = scalar_lea.sflag [#allocation3], %s143
        %s145 = sand.u32 %s49, 1
        %s146 = smul.addr %s145, 16
        %s147 = scalar_lea.vmem [#allocation2], %s146
        // Predicated region
        $region25: #{tpu_custom_call.1} parent=23 // pred_check
          %p148 = pneg %p62
        $region26: #{tpu_custom_call.1} parent=23 // pred_check_branch
          %150 = sbr.rel (%p148) target = $region28
        $region27: #{tpu_custom_call.1} parent=23 // pred_region
          %151 = dma.done %s144, 256
        $region28: #{tpu_custom_call.1} parent=23 // pred_fallthru
          _
        %s152 = sand.u32 %s49, 1
        %s153 = scalar_lea.sflag [#allocation3], %s152
        %s154 = sand.u32 %s49, 1
        %s155 = smul.addr %s154, 16
        %s156 = scalar_lea.vmem [#allocation2], %s155
        %p157 = pneg %p62
        %p158 = pneg %p59
        %p159 = pneg %p92
        %p160 = pneg %p89
        %s161 = sand.u32 %s79, 1
        %s162 = scalar_lea.sflag [#allocation4], %s161
        %s163 = sand.u32 %s79, 1
        %s164 = smul.addr %s163, 32
        %s165 = scalar_lea.vmem [#allocation5], %s164
        %s166 = smul.u32 2, %s25
        %v167 = vld [vmem:[%s147] ss:$2 sm:$0xff]
        %169 = vrot.lane.b32.xlu0 %v167, 126
        %v170 = vpop.permute.xlu0 %169
        %172 = vrot.lane.b32.xlu0 %v167, 124
        %v173 = vpop.permute.xlu0 %172
        %175 = vrot.lane.b32.xlu0 %v167, 122
        %v176 = vpop.permute.xlu0 %175
        %178 = vrot.lane.b32.xlu0 %v167, 120
        %v179 = vpop.permute.xlu0 %178
        %181 = vrot.lane.b32.xlu0 %v167, 118
        %v182 = vpop.permute.xlu0 %181
        %184 = vrot.lane.b32.xlu0 %v167, 116
        %v185 = vpop.permute.xlu0 %184
        %187 = vrot.lane.b32.xlu0 %v167, 114
        %v188 = vpop.permute.xlu0 %187
        %v190 = vcombine.low %v167, %v173
        %v191 = vcombine.high %v167, %v173
        %v193 = vunpack.c.l.s4 1983009808
        %v194 = vunpack.c.0.s8 %v193
        %v195 = vlaneseq
        %v196 = vshrl.u32 %v195, 7
        %v197 = vsub.s32 %v194, %v196
        %v198 = vrot.slane %v190, %v197
        %v200 = vunpack.c.l.s4 1983009808
        %v201 = vunpack.c.0.s8 %v200
        %v202 = vlaneseq
        %v203 = vshrl.u32 %v202, 7
        %v204 = vsub.s32 %v201, %v203
        %v205 = vrot.slane %v191, %v204
        %v206 = vcombine.low %v170, %v176
        %v207 = vcombine.high %v170, %v176
        %v209 = vunpack.c.l.s4 1983009808
        %v210 = vunpack.c.0.s8 %v209
        %v211 = vlaneseq
        %v212 = vshrl.u32 %v211, 7
        %v213 = vsub.s32 %v210, %v212
        %v214 = vrot.slane %v206, %v213
        %v216 = vunpack.c.l.s4 1983009808
        %v217 = vunpack.c.0.s8 %v216
        %v218 = vlaneseq
        %v219 = vshrl.u32 %v218, 7
        %v220 = vsub.s32 %v217, %v219
        %v221 = vrot.slane %v207, %v220
        %v222 = vcombine.low %v179, %v185
        %v223 = vcombine.high %v179, %v185
        %v225 = vunpack.c.l.s4 1983009808
        %v226 = vunpack.c.0.s8 %v225
        %v227 = vlaneseq
        %v228 = vshrl.u32 %v227, 7
        %v229 = vsub.s32 %v226, %v228
        %v230 = vrot.slane %v222, %v229
        %v232 = vunpack.c.l.s4 1983009808
        %v233 = vunpack.c.0.s8 %v232
        %v234 = vlaneseq
        %v235 = vshrl.u32 %v234, 7
        %v236 = vsub.s32 %v233, %v235
        %v237 = vrot.slane %v223, %v236
        %v238 = vcombine.low %v182, %v188
        %v239 = vcombine.high %v182, %v188
        %v241 = vunpack.c.l.s4 1983009808
        %v242 = vunpack.c.0.s8 %v241
        %v243 = vlaneseq
        %v244 = vshrl.u32 %v243, 7
        %v245 = vsub.s32 %v242, %v244
        %v246 = vrot.slane %v238, %v245
        %v248 = vunpack.c.l.s4 1983009808
        %v249 = vunpack.c.0.s8 %v248
        %v250 = vlaneseq
        %v251 = vshrl.u32 %v250, 7
        %v252 = vsub.s32 %v249, %v251
        %v253 = vrot.slane %v239, %v252
        %v254 = vcombine.low %v198, %v214
        %v255 = vcombine.high %v198, %v214
        %v257 = vunpack.c.l.s4 1934713408
        %v258 = vunpack.c.0.s8 %v257
        %v259 = vlaneseq
        %v260 = vshrl.u32 %v259, 7
        %v261 = vsub.s32 %v258, %v260
        %v262 = vrot.slane %v254, %v261
        %v264 = vunpack.c.l.s4 1934713408
        %v265 = vunpack.c.0.s8 %v264
        %v266 = vlaneseq
        %v267 = vshrl.u32 %v266, 7
        %v268 = vsub.s32 %v265, %v267
        %v269 = vrot.slane %v255, %v268
        %v270 = vcombine.low %v205, %v221
        %v271 = vcombine.high %v205, %v221
        %v273 = vunpack.c.l.s4 1934713408
        %v274 = vunpack.c.0.s8 %v273
        %v275 = vlaneseq
        %v276 = vshrl.u32 %v275, 7
        %v277 = vsub.s32 %v274, %v276
        %v278 = vrot.slane %v270, %v277
        %v280 = vunpack.c.l.s4 1934713408
        %v281 = vunpack.c.0.s8 %v280
        %v282 = vlaneseq
        %v283 = vshrl.u32 %v282, 7
        %v284 = vsub.s32 %v281, %v283
        %v285 = vrot.slane %v271, %v284
        %v286 = vcombine.low %v230, %v246
        %v287 = vcombine.high %v230, %v246
        %v289 = vunpack.c.l.s4 1934713408
        %v290 = vunpack.c.0.s8 %v289
        %v291 = vlaneseq
        %v292 = vshrl.u32 %v291, 7
        %v293 = vsub.s32 %v290, %v292
        %v294 = vrot.slane %v286, %v293
        %v296 = vunpack.c.l.s4 1934713408
        %v297 = vunpack.c.0.s8 %v296
        %v298 = vlaneseq
        %v299 = vshrl.u32 %v298, 7
        %v300 = vsub.s32 %v297, %v299
        %v301 = vrot.slane %v287, %v300
        %v302 = vcombine.low %v237, %v253
        %v303 = vcombine.high %v237, %v253
        %v305 = vunpack.c.l.s4 1934713408
        %v306 = vunpack.c.0.s8 %v305
        %v307 = vlaneseq
        %v308 = vshrl.u32 %v307, 7
        %v309 = vsub.s32 %v306, %v308
        %v310 = vrot.slane %v302, %v309
        %v312 = vunpack.c.l.s4 1934713408
        %v313 = vunpack.c.0.s8 %v312
        %v314 = vlaneseq
        %v315 = vshrl.u32 %v314, 7
        %v316 = vsub.s32 %v313, %v315
        %v317 = vrot.slane %v303, %v316
        %v318 = vcombine.low %v262, %v294
        %v319 = vcombine.high %v262, %v294
        %v320 = vcombine.low %v269, %v301
        %v321 = vcombine.high %v269, %v301
        %v322 = vcombine.low %v278, %v310
        %v323 = vcombine.high %v278, %v310
        %v324 = vcombine.low %v285, %v317
        %v325 = vcombine.high %v285, %v317
        %326 = vxpose.xlu0.b32.start [1/16] %v318, 128
        %327 = vxpose.xlu0.b32.cont [2/16] 0.0, 128
        %328 = vxpose.xlu0.b32.cont [3/16] 0.0, 128
        %329 = vxpose.xlu0.b32.cont [4/16] 0.0, 128
        %330 = vxpose.xlu0.b32.cont [5/16] 0.0, 128
        %331 = vxpose.xlu0.b32.cont [6/16] 0.0, 128
        %332 = vxpose.xlu0.b32.cont [7/16] 0.0, 128
        %333 = vxpose.xlu0.b32.cont [8/16] 0.0, 128
        %334 = vxpose.xlu0.b32.cont [9/16] 0.0, 128
        %335 = vxpose.xlu0.b32.cont [10/16] 0.0, 128
        %336 = vxpose.xlu0.b32.cont [11/16] 0.0, 128
        %337 = vxpose.xlu0.b32.cont [12/16] 0.0, 128
        %338 = vxpose.xlu0.b32.cont [13/16] 0.0, 128
        %339 = vxpose.xlu0.b32.cont [14/16] 0.0, 128
        %340 = vxpose.xlu0.b32.cont [15/16] 0.0, 128
        %341 = vxpose.xlu0.b32.end [16/16] 0.0, 128
        %v342 = vpop.trf.xlu0
        %v343 = vpop.trf.xlu0
        %v344 = vpop.trf.xlu0
        %v345 = vpop.trf.xlu0
        %v346 = vpop.trf.xlu0
        %v347 = vpop.trf.xlu0
        %v348 = vpop.trf.xlu0
        %v349 = vpop.trf.xlu0
        %v350 = vpop.trf.xlu0
        %v351 = vpop.trf.xlu0
        %v352 = vpop.trf.xlu0
        %v353 = vpop.trf.xlu0
        %v354 = vpop.trf.xlu0
        %v355 = vpop.trf.xlu0
        %v356 = vpop.trf.xlu0
        %v357 = vpop.trf.xlu0
        %358 = vxpose.xlu0.b32.start [1/16] %v319, 128
        %359 = vxpose.xlu0.b32.cont [2/16] 0.0, 128
        %360 = vxpose.xlu0.b32.cont [3/16] 0.0, 128
        %361 = vxpose.xlu0.b32.cont [4/16] 0.0, 128
        %362 = vxpose.xlu0.b32.cont [5/16] 0.0, 128
        %363 = vxpose.xlu0.b32.cont [6/16] 0.0, 128
        %364 = vxpose.xlu0.b32.cont [7/16] 0.0, 128
        %365 = vxpose.xlu0.b32.cont [8/16] 0.0, 128
        %366 = vxpose.xlu0.b32.cont [9/16] 0.0, 128
        %367 = vxpose.xlu0.b32.cont [10/16] 0.0, 128
        %368 = vxpose.xlu0.b32.cont [11/16] 0.0, 128
        %369 = vxpose.xlu0.b32.cont [12/16] 0.0, 128
        %370 = vxpose.xlu0.b32.cont [13/16] 0.0, 128
        %371 = vxpose.xlu0.b32.cont [14/16] 0.0, 128
        %372 = vxpose.xlu0.b32.cont [15/16] 0.0, 128
        %373 = vxpose.xlu0.b32.end [16/16] 0.0, 128
        %v374 = vpop.trf.xlu0
        %v375 = vpop.trf.xlu0
        %v376 = vpop.trf.xlu0
        %v377 = vpop.trf.xlu0
        %v378 = vpop.trf.xlu0
        %v379 = vpop.trf.xlu0
        %v380 = vpop.trf.xlu0
        %v381 = vpop.trf.xlu0
        %v382 = vpop.trf.xlu0
        %v383 = vpop.trf.xlu0
        %v384 = vpop.trf.xlu0
        %v385 = vpop.trf.xlu0
        %v386 = vpop.trf.xlu0
        %v387 = vpop.trf.xlu0
        %v388 = vpop.trf.xlu0
        %v389 = vpop.trf.xlu0
        %390 = vxpose.xlu0.b32.start [1/16] %v320, 128
        %391 = vxpose.xlu0.b32.cont [2/16] 0.0, 128
        %392 = vxpose.xlu0.b32.cont [3/16] 0.0, 128
        %393 = vxpose.xlu0.b32.cont [4/16] 0.0, 128
        %394 = vxpose.xlu0.b32.cont [5/16] 0.0, 128
        %395 = vxpose.xlu0.b32.cont [6/16] 0.0, 128
        %396 = vxpose.xlu0.b32.cont [7/16] 0.0, 128
        %397 = vxpose.xlu0.b32.cont [8/16] 0.0, 128
        %398 = vxpose.xlu0.b32.cont [9/16] 0.0, 128
        %399 = vxpose.xlu0.b32.cont [10/16] 0.0, 128
        %400 = vxpose.xlu0.b32.cont [11/16] 0.0, 128
        %401 = vxpose.xlu0.b32.cont [12/16] 0.0, 128
        %402 = vxpose.xlu0.b32.cont [13/16] 0.0, 128
        %403 = vxpose.xlu0.b32.cont [14/16] 0.0, 128
        %404 = vxpose.xlu0.b32.cont [15/16] 0.0, 128
        %405 = vxpose.xlu0.b32.end [16/16] 0.0, 128
        %v406 = vpop.trf.xlu0
        %v407 = vpop.trf.xlu0
        %v408 = vpop.trf.xlu0
        %v409 = vpop.trf.xlu0
        %v410 = vpop.trf.xlu0
        %v411 = vpop.trf.xlu0
        %v412 = vpop.trf.xlu0
        %v413 = vpop.trf.xlu0
        %v414 = vpop.trf.xlu0
        %v415 = vpop.trf.xlu0
        %v416 = vpop.trf.xlu0
        %v417 = vpop.trf.xlu0
        %v418 = vpop.trf.xlu0
        %v419 = vpop.trf.xlu0
        %v420 = vpop.trf.xlu0
        %v421 = vpop.trf.xlu0
        %422 = vxpose.xlu0.b32.start [1/16] %v321, 128
        %423 = vxpose.xlu0.b32.cont [2/16] 0.0, 128
        %424 = vxpose.xlu0.b32.cont [3/16] 0.0, 128
        %425 = vxpose.xlu0.b32.cont [4/16] 0.0, 128
        %426 = vxpose.xlu0.b32.cont [5/16] 0.0, 128
        %427 = vxpose.xlu0.b32.cont [6/16] 0.0, 128
        %428 = vxpose.xlu0.b32.cont [7/16] 0.0, 128
        %429 = vxpose.xlu0.b32.cont [8/16] 0.0, 128
        %430 = vxpose.xlu0.b32.cont [9/16] 0.0, 128
        %431 = vxpose.xlu0.b32.cont [10/16] 0.0, 128
        %432 = vxpose.xlu0.b32.cont [11/16] 0.0, 128
        %433 = vxpose.xlu0.b32.cont [12/16] 0.0, 128
        %434 = vxpose.xlu0.b32.cont [13/16] 0.0, 128
        %435 = vxpose.xlu0.b32.cont [14/16] 0.0, 128
        %436 = vxpose.xlu0.b32.cont [15/16] 0.0, 128
        %437 = vxpose.xlu0.b32.end [16/16] 0.0, 128
        %v438 = vpop.trf.xlu0
        %v439 = vpop.trf.xlu0
        %v440 = vpop.trf.xlu0
        %v441 = vpop.trf.xlu0
        %v442 = vpop.trf.xlu0
        %v443 = vpop.trf.xlu0
        %v444 = vpop.trf.xlu0
        %v445 = vpop.trf.xlu0
        %v446 = vpop.trf.xlu0
        %v447 = vpop.trf.xlu0
        %v448 = vpop.trf.xlu0
        %v449 = vpop.trf.xlu0
        %v450 = vpop.trf.xlu0
        %v451 = vpop.trf.xlu0
        %v452 = vpop.trf.xlu0
        %v453 = vpop.trf.xlu0
        %454 = vxpose.xlu0.b32.start [1/16] %v322, 128
        %455 = vxpose.xlu0.b32.cont [2/16] 0.0, 128
        %456 = vxpose.xlu0.b32.cont [3/16] 0.0, 128
        %457 = vxpose.xlu0.b32.cont [4/16] 0.0, 128
        %458 = vxpose.xlu0.b32.cont [5/16] 0.0, 128
        %459 = vxpose.xlu0.b32.cont [6/16] 0.0, 128
        %460 = vxpose.xlu0.b32.cont [7/16] 0.0, 128
        %461 = vxpose.xlu0.b32.cont [8/16] 0.0, 128
        %462 = vxpose.xlu0.b32.cont [9/16] 0.0, 128
        %463 = vxpose.xlu0.b32.cont [10/16] 0.0, 128
        %464 = vxpose.xlu0.b32.cont [11/16] 0.0, 128
        %465 = vxpose.xlu0.b32.cont [12/16] 0.0, 128
        %466 = vxpose.xlu0.b32.cont [13/16] 0.0, 128
        %467 = vxpose.xlu0.b32.cont [14/16] 0.0, 128
        %468 = vxpose.xlu0.b32.cont [15/16] 0.0, 128
        %469 = vxpose.xlu0.b32.end [16/16] 0.0, 128
        %v470 = vpop.trf.xlu0
        %v471 = vpop.trf.xlu0
        %v472 = vpop.trf.xlu0
        %v473 = vpop.trf.xlu0
        %v474 = vpop.trf.xlu0
        %v475 = vpop.trf.xlu0
        %v476 = vpop.trf.xlu0
        %v477 = vpop.trf.xlu0
        %v478 = vpop.trf.xlu0
        %v479 = vpop.trf.xlu0
        %v480 = vpop.trf.xlu0
        %v481 = vpop.trf.xlu0
        %v482 = vpop.trf.xlu0
        %v483 = vpop.trf.xlu0
        %v484 = vpop.trf.xlu0
        %v485 = vpop.trf.xlu0
        %486 = vxpose.xlu0.b32.start [1/16] %v323, 128
        %487 = vxpose.xlu0.b32.cont [2/16] 0.0, 128
        %488 = vxpose.xlu0.b32.cont [3/16] 0.0, 128
        %489 = vxpose.xlu0.b32.cont [4/16] 0.0, 128
        %490 = vxpose.xlu0.b32.cont [5/16] 0.0, 128
        %491 = vxpose.xlu0.b32.cont [6/16] 0.0, 128
        %492 = vxpose.xlu0.b32.cont [7/16] 0.0, 128
        %493 = vxpose.xlu0.b32.cont [8/16] 0.0, 128
        %494 = vxpose.xlu0.b32.cont [9/16] 0.0, 128
        %495 = vxpose.xlu0.b32.cont [10/16] 0.0, 128
        %496 = vxpose.xlu0.b32.cont [11/16] 0.0, 128
        %497 = vxpose.xlu0.b32.cont [12/16] 0.0, 128
        %498 = vxpose.xlu0.b32.cont [13/16] 0.0, 128
        %499 = vxpose.xlu0.b32.cont [14/16] 0.0, 128
        %500 = vxpose.xlu0.b32.cont [15/16] 0.0, 128
        %501 = vxpose.xlu0.b32.end [16/16] 0.0, 128
        %v502 = vpop.trf.xlu0
        %v503 = vpop.trf.xlu0
        %v504 = vpop.trf.xlu0
        %v505 = vpop.trf.xlu0
        %v506 = vpop.trf.xlu0
        %v507 = vpop.trf.xlu0
        %v508 = vpop.trf.xlu0
        %v509 = vpop.trf.xlu0
        %v510 = vpop.trf.xlu0
        %v511 = vpop.trf.xlu0
        %v512 = vpop.trf.xlu0
        %v513 = vpop.trf.xlu0
        %v514 = vpop.trf.xlu0
        %v515 = vpop.trf.xlu0
        %v516 = vpop.trf.xlu0
        %v517 = vpop.trf.xlu0
        %518 = vxpose.xlu0.b32.start [1/16] %v324, 128
        %519 = vxpose.xlu0.b32.cont [2/16] 0.0, 128
        %520 = vxpose.xlu0.b32.cont [3/16] 0.0, 128
        %521 = vxpose.xlu0.b32.cont [4/16] 0.0, 128
        %522 = vxpose.xlu0.b32.cont [5/16] 0.0, 128
        %523 = vxpose.xlu0.b32.cont [6/16] 0.0, 128
        %524 = vxpose.xlu0.b32.cont [7/16] 0.0, 128
        %525 = vxpose.xlu0.b32.cont [8/16] 0.0, 128
        %526 = vxpose.xlu0.b32.cont [9/16] 0.0, 128
        %527 = vxpose.xlu0.b32.cont [10/16] 0.0, 128
        %528 = vxpose.xlu0.b32.cont [11/16] 0.0, 128
        %529 = vxpose.xlu0.b32.cont [12/16] 0.0, 128
        %530 = vxpose.xlu0.b32.cont [13/16] 0.0, 128
        %531 = vxpose.xlu0.b32.cont [14/16] 0.0, 128
        %532 = vxpose.xlu0.b32.cont [15/16] 0.0, 128
        %533 = vxpose.xlu0.b32.end [16/16] 0.0, 128
        %v534 = vpop.trf.xlu0
        %v535 = vpop.trf.xlu0
        %v536 = vpop.trf.xlu0
        %v537 = vpop.trf.xlu0
        %v538 = vpop.trf.xlu0
        %v539 = vpop.trf.xlu0
        %v540 = vpop.trf.xlu0
        %v541 = vpop.trf.xlu0
        %v542 = vpop.trf.xlu0
        %v543 = vpop.trf.xlu0
        %v544 = vpop.trf.xlu0
        %v545 = vpop.trf.xlu0
        %v546 = vpop.trf.xlu0
        %v547 = vpop.trf.xlu0
        %v548 = vpop.trf.xlu0
        %v549 = vpop.trf.xlu0
        %550 = vxpose.xlu0.b32.start [1/16] %v325, 128
        %551 = vxpose.xlu0.b32.cont [2/16] 0.0, 128
        %552 = vxpose.xlu0.b32.cont [3/16] 0.0, 128
        %553 = vxpose.xlu0.b32.cont [4/16] 0.0, 128
        %554 = vxpose.xlu0.b32.cont [5/16] 0.0, 128
        %555 = vxpose.xlu0.b32.cont [6/16] 0.0, 128
        %556 = vxpose.xlu0.b32.cont [7/16] 0.0, 128
        %557 = vxpose.xlu0.b32.cont [8/16] 0.0, 128
        %558 = vxpose.xlu0.b32.cont [9/16] 0.0, 128
        %559 = vxpose.xlu0.b32.cont [10/16] 0.0, 128
        %560 = vxpose.xlu0.b32.cont [11/16] 0.0, 128
        %561 = vxpose.xlu0.b32.cont [12/16] 0.0, 128
        %562 = vxpose.xlu0.b32.cont [13/16] 0.0, 128
        %563 = vxpose.xlu0.b32.cont [14/16] 0.0, 128
        %564 = vxpose.xlu0.b32.cont [15/16] 0.0, 128
        %565 = vxpose.xlu0.b32.end [16/16] 0.0, 128
        %v566 = vpop.trf.xlu0
        %v567 = vpop.trf.xlu0
        %v568 = vpop.trf.xlu0
        %v569 = vpop.trf.xlu0
        %v570 = vpop.trf.xlu0
        %v571 = vpop.trf.xlu0
        %v572 = vpop.trf.xlu0
        %v573 = vpop.trf.xlu0
        %v574 = vpop.trf.xlu0
        %v575 = vpop.trf.xlu0
        %v576 = vpop.trf.xlu0
        %v577 = vpop.trf.xlu0
        %v578 = vpop.trf.xlu0
        %v579 = vpop.trf.xlu0
        %v580 = vpop.trf.xlu0
        %v581 = vpop.trf.xlu0
        %v582 = vcombine.low %v342, %v406
        %v584 = vunpack.c.l.s4 1983009808
        %v585 = vunpack.c.0.s8 %v584
        %v586 = vlaneseq
        %v587 = vshrl.u32 %v586, 7
        %v588 = vsub.s32 %v585, %v587
        %v589 = vrot.slane %v582, %v588
        %v590 = vcombine.low %v374, %v438
        %v592 = vunpack.c.l.s4 1983009808
        %v593 = vunpack.c.0.s8 %v592
        %v594 = vlaneseq
        %v595 = vshrl.u32 %v594, 7
        %v596 = vsub.s32 %v593, %v595
        %v597 = vrot.slane %v590, %v596
        %v598 = vcombine.low %v470, %v534
        %v600 = vunpack.c.l.s4 1983009808
        %v601 = vunpack.c.0.s8 %v600
        %v602 = vlaneseq
        %v603 = vshrl.u32 %v602, 7
        %v604 = vsub.s32 %v601, %v603
        %v605 = vrot.slane %v598, %v604
        %v606 = vcombine.low %v502, %v566
        %v608 = vunpack.c.l.s4 1983009808
        %v609 = vunpack.c.0.s8 %v608
        %v610 = vlaneseq
        %v611 = vshrl.u32 %v610, 7
        %v612 = vsub.s32 %v609, %v611
        %v613 = vrot.slane %v606, %v612
        %v614 = vcombine.low %v589, %v597
        %v616 = vunpack.c.l.s4 1934713408
        %v617 = vunpack.c.0.s8 %v616
        %v618 = vlaneseq
        %v619 = vshrl.u32 %v618, 7
        %v620 = vsub.s32 %v617, %v619
        %v621 = vrot.slane %v614, %v620
        %v622 = vcombine.low %v605, %v613
        %v624 = vunpack.c.l.s4 1934713408
        %v625 = vunpack.c.0.s8 %v624
        %v626 = vlaneseq
        %v627 = vshrl.u32 %v626, 7
        %v628 = vsub.s32 %v625, %v627
        %v629 = vrot.slane %v622, %v628
        %v630 = vcombine.low %v621, %v629
        %v631 = vcombine.high %v621, %v629
        %vm632 = vcmask 64512
        %633 = vst.msk [vmem:[%s165] sm:$0xff] %vm632, %v630
        %634 = vst.msk [vmem:[%s165 + $0x8] sm:$0xff] %vm632, %v631
        %s635 = scalar_lea.vmem %s147, 1 [#allocation2]
        %v636 = vld [vmem:[%s635] ss:$2 sm:$0xff]
        %638 = vrot.lane.b32.xlu0 %v636, 126
        %v639 = vpop.permute.xlu0 %638
        %641 = vrot.lane.b32.xlu0 %v636, 124
        %v642 = vpop.permute.xlu0 %641
        %644 = vrot.lane.b32.xlu0 %v636, 122
        %v645 = vpop.permute.xlu0 %644
        %647 = vrot.lane.b32.xlu0 %v636, 120
        %v648 = vpop.permute.xlu0 %647
        %650 = vrot.lane.b32.xlu0 %v636, 118
        %v651 = vpop.permute.xlu0 %650
        %653 = vrot.lane.b32.xlu0 %v636, 116
        %v654 = vpop.permute.xlu0 %653
        %656 = vrot.lane.b32.xlu0 %v636, 114
        %v657 = vpop.permute.xlu0 %656
        %v659 = vcombine.low %v636, %v642
        %v660 = vcombine.high %v636, %v642
        %v662 = vunpack.c.l.s4 1983009808
        %v663 = vunpack.c.0.s8 %v662
        %v664 = vlaneseq
        %v665 = vshrl.u32 %v664, 7
        %v666 = vsub.s32 %v663, %v665
        %v667 = vrot.slane %v659, %v666
        %v669 = vunpack.c.l.s4 1983009808
        %v670 = vunpack.c.0.s8 %v669
        %v671 = vlaneseq
        %v672 = vshrl.u32 %v671, 7
        %v673 = vsub.s32 %v670, %v672
        %v674 = vrot.slane %v660, %v673
        %v675 = vcombine.low %v639, %v645
        %v676 = vcombine.high %v639, %v645
        %v678 = vunpack.c.l.s4 1983009808
        %v679 = vunpack.c.0.s8 %v678
        %v680 = vlaneseq
        %v681 = vshrl.u32 %v680, 7
        %v682 = vsub.s32 %v679, %v681
        %v683 = vrot.slane %v675, %v682
        %v685 = vunpack.c.l.s4 1983009808
        %v686 = vunpack.c.0.s8 %v685
        %v687 = vlaneseq
        %v688 = vshrl.u32 %v687, 7
        %v689 = vsub.s32 %v686, %v688
        %v690 = vrot.slane %v676, %v689
        %v691 = vcombine.low %v648, %v654
        %v692 = vcombine.high %v648, %v654
        %v694 = vunpack.c.l.s4 1983009808
        %v695 = vunpack.c.0.s8 %v694
        %v696 = vlaneseq
        %v697 = vshrl.u32 %v696, 7
        %v698 = vsub.s32 %v695, %v697
        %v699 = vrot.slane %v691, %v698
        %v701 = vunpack.c.l.s4 1983009808
        %v702 = vunpack.c.0.s8 %v701
        %v703 = vlaneseq
        %v704 = vshrl.u32 %v703, 7
        %v705 = vsub.s32 %v702, %v704
        %v706 = vrot.slane %v692, %v705
        %v707 = vcombine.low %v651, %v657
        %v708 = vcombine.high %v651, %v657
        %v710 = vunpack.c.l.s4 1983009808
        %v711 = vunpack.c.0.s8 %v710
        %v712 = vlaneseq
        %v713 = vshrl.u32 %v712, 7
        %v714 = vsub.s32 %v711, %v713
        %v715 = vrot.slane %v707, %v714
        %v717 = vunpack.c.l.s4 1983009808
        %v718 = vunpack.c.0.s8 %v717
        %v719 = vlaneseq
        %v720 = vshrl.u32 %v719, 7
        %v721 = vsub.s32 %v718, %v720
        %v722 = vrot.slane %v708, %v721
        %v723 = vcombine.low %v667, %v683
        %v724 = vcombine.high %v667, %v683
        %v726 = vunpack.c.l.s4 1934713408
        %v727 = vunpack.c.0.s8 %v726
        %v728 = vlaneseq
        %v729 = vshrl.u32 %v728, 7
        %v730 = vsub.s32 %v727, %v729
        %v731 = vrot.slane %v723, %v730
        %v733 = vunpack.c.l.s4 1934713408
        %v734 = vunpack.c.0.s8 %v733
        %v735 = vlaneseq
        %v736 = vshrl.u32 %v735, 7
        %v737 = vsub.s32 %v734, %v736
        %v738 = vrot.slane %v724, %v737
        %v739 = vcombine.low %v674, %v690
        %v740 = vcombine.high %v674, %v690
        %v742 = vunpack.c.l.s4 1934713408
        %v743 = vunpack.c.0.s8 %v742
        %v744 = vlaneseq
        %v745 = vshrl.u32 %v744, 7
        %v746 = vsub.s32 %v743, %v745
        %v747 = vrot.slane %v739, %v746
        %v749 = vunpack.c.l.s4 1934713408
        %v750 = vunpack.c.0.s8 %v749
        %v751 = vlaneseq
        %v752 = vshrl.u32 %v751, 7
        %v753 = vsub.s32 %v750, %v752
        %v754 = vrot.slane %v740, %v753
        %v755 = vcombine.low %v699, %v715
        %v756 = vcombine.high %v699, %v715
        %v758 = vunpack.c.l.s4 1934713408
        %v759 = vunpack.c.0.s8 %v758
        %v760 = vlaneseq
        %v761 = vshrl.u32 %v760, 7
        %v762 = vsub.s32 %v759, %v761
        %v763 = vrot.slane %v755, %v762
        %v765 = vunpack.c.l.s4 1934713408
        %v766 = vunpack.c.0.s8 %v765
        %v767 = vlaneseq
        %v768 = vshrl.u32 %v767, 7
        %v769 = vsub.s32 %v766, %v768
        %v770 = vrot.slane %v756, %v769
        %v771 = vcombine.low %v706, %v722
        %v772 = vcombine.high %v706, %v722
        %v774 = vunpack.c.l.s4 1934713408
        %v775 = vunpack.c.0.s8 %v774
        %v776 = vlaneseq
        %v777 = vshrl.u32 %v776, 7
        %v778 = vsub.s32 %v775, %v777
        %v779 = vrot.slane %v771, %v778
        %v781 = vunpack.c.l.s4 1934713408
        %v782 = vunpack.c.0.s8 %v781
        %v783 = vlaneseq
        %v784 = vshrl.u32 %v783, 7
        %v785 = vsub.s32 %v782, %v784
        %v786 = vrot.slane %v772, %v785
        %v787 = vcombine.low %v731, %v763
        %v788 = vcombine.high %v731, %v763
        %v789 = vcombine.low %v738, %v770
        %v790 = vcombine.high %v738, %v770
        %v791 = vcombine.low %v747, %v779
        %v792 = vcombine.high %v747, %v779
        %v793 = vcombine.low %v754, %v786
        %v794 = vcombine.high %v754, %v786
        %795 = vxpose.xlu0.b32.start [1/16] %v787, 128
        %796 = vxpose.xlu0.b32.cont [2/16] 0.0, 128
        %797 = vxpose.xlu0.b32.cont [3/16] 0.0, 128
        %798 = vxpose.xlu0.b32.cont [4/16] 0.0, 128
        %799 = vxpose.xlu0.b32.cont [5/16] 0.0, 128
        %800 = vxpose.xlu0.b32.cont [6/16] 0.0, 128
        %801 = vxpose.xlu0.b32.cont [7/16] 0.0, 128
        %802 = vxpose.xlu0.b32.cont [8/16] 0.0, 128
        %803 = vxpose.xlu0.b32.cont [9/16] 0.0, 128
        %804 = vxpose.xlu0.b32.cont [10/16] 0.0, 128
        %805 = vxpose.xlu0.b32.cont [11/16] 0.0, 128
        %806 = vxpose.xlu0.b32.cont [12/16] 0.0, 128
        %807 = vxpose.xlu0.b32.cont [13/16] 0.0, 128
        %808 = vxpose.xlu0.b32.cont [14/16] 0.0, 128
        %809 = vxpose.xlu0.b32.cont [15/16] 0.0, 128
        %810 = vxpose.xlu0.b32.end [16/16] 0.0, 128
        %v811 = vpop.trf.xlu0
        %v812 = vpop.trf.xlu0
        %v813 = vpop.trf.xlu0
        %v814 = vpop.trf.xlu0
        %v815 = vpop.trf.xlu0
        %v816 = vpop.trf.xlu0
        %v817 = vpop.trf.xlu0
        %v818 = vpop.trf.xlu0
        %v819 = vpop.trf.xlu0
        %v820 = vpop.trf.xlu0
        %v821 = vpop.trf.xlu0
        %v822 = vpop.trf.xlu0
        %v823 = vpop.trf.xlu0
        %v824 = vpop.trf.xlu0
        %v825 = vpop.trf.xlu0
        %v826 = vpop.trf.xlu0
        %827 = vxpose.xlu0.b32.start [1/16] %v788, 128
        %828 = vxpose.xlu0.b32.cont [2/16] 0.0, 128
        %829 = vxpose.xlu0.b32.cont [3/16] 0.0, 128
        %830 = vxpose.xlu0.b32.cont [4/16] 0.0, 128
        %831 = vxpose.xlu0.b32.cont [5/16] 0.0, 128
        %832 = vxpose.xlu0.b32.cont [6/16] 0.0, 128
        %833 = vxpose.xlu0.b32.cont [7/16] 0.0, 128
        %834 = vxpose.xlu0.b32.cont [8/16] 0.0, 128
        %835 = vxpose.xlu0.b32.cont [9/16] 0.0, 128
        %836 = vxpose.xlu0.b32.cont [10/16] 0.0, 128
        %837 = vxpose.xlu0.b32.cont [11/16] 0.0, 128
        %838 = vxpose.xlu0.b32.cont [12/16] 0.0, 128
        %839 = vxpose.xlu0.b32.cont [13/16] 0.0, 128
        %840 = vxpose.xlu0.b32.cont [14/16] 0.0, 128
        %841 = vxpose.xlu0.b32.cont [15/16] 0.0, 128
        %842 = vxpose.xlu0.b32.end [16/16] 0.0, 128
        %v843 = vpop.trf.xlu0
        %v844 = vpop.trf.xlu0
        %v845 = vpop.trf.xlu0
        %v846 = vpop.trf.xlu0
        %v847 = vpop.trf.xlu0
        %v848 = vpop.trf.xlu0
        %v849 = vpop.trf.xlu0
        %v850 = vpop.trf.xlu0
        %v851 = vpop.trf.xlu0
        %v852 = vpop.trf.xlu0
        %v853 = vpop.trf.xlu0
        %v854 = vpop.trf.xlu0
        %v855 = vpop.trf.xlu0
        %v856 = vpop.trf.xlu0
        %v857 = vpop.trf.xlu0
        %v858 = vpop.trf.xlu0
        %859 = vxpose.xlu0.b32.start [1/16] %v789, 128
        %860 = vxpose.xlu0.b32.cont [2/16] 0.0, 128
        %861 = vxpose.xlu0.b32.cont [3/16] 0.0, 128
        %862 = vxpose.xlu0.b32.cont [4/16] 0.0, 128
        %863 = vxpose.xlu0.b32.cont [5/16] 0.0, 128
        %864 = vxpose.xlu0.b32.cont [6/16] 0.0, 128
        %865 = vxpose.xlu0.b32.cont [7/16] 0.0, 128
        %866 = vxpose.xlu0.b32.cont [8/16] 0.0, 128
        %867 = vxpose.xlu0.b32.cont [9/16] 0.0, 128
        %868 = vxpose.xlu0.b32.cont [10/16] 0.0, 128
        %869 = vxpose.xlu0.b32.cont [11/16] 0.0, 128
        %870 = vxpose.xlu0.b32.cont [12/16] 0.0, 128
        %871 = vxpose.xlu0.b32.cont [13/16] 0.0, 128
        %872 = vxpose.xlu0.b32.cont [14/16] 0.0, 128
        %873 = vxpose.xlu0.b32.cont [15/16] 0.0, 128
        %874 = vxpose.xlu0.b32.end [16/16] 0.0, 128
        %v875 = vpop.trf.xlu0
        %v876 = vpop.trf.xlu0
        %v877 = vpop.trf.xlu0
        %v878 = vpop.trf.xlu0
        %v879 = vpop.trf.xlu0
        %v880 = vpop.trf.xlu0
        %v881 = vpop.trf.xlu0
        %v882 = vpop.trf.xlu0
        %v883 = vpop.trf.xlu0
        %v884 = vpop.trf.xlu0
        %v885 = vpop.trf.xlu0
        %v886 = vpop.trf.xlu0
        %v887 = vpop.trf.xlu0
        %v888 = vpop.trf.xlu0
        %v889 = vpop.trf.xlu0
        %v890 = vpop.trf.xlu0
        %891 = vxpose.xlu0.b32.start [1/16] %v790, 128
        %892 = vxpose.xlu0.b32.cont [2/16] 0.0, 128
        %893 = vxpose.xlu0.b32.cont [3/16] 0.0, 128
        %894 = vxpose.xlu0.b32.cont [4/16] 0.0, 128
        %895 = vxpose.xlu0.b32.cont [5/16] 0.0, 128
        %896 = vxpose.xlu0.b32.cont [6/16] 0.0, 128
        %897 = vxpose.xlu0.b32.cont [7/16] 0.0, 128
        %898 = vxpose.xlu0.b32.cont [8/16] 0.0, 128
        %899 = vxpose.xlu0.b32.cont [9/16] 0.0, 128
        %900 = vxpose.xlu0.b32.cont [10/16] 0.0, 128
        %901 = vxpose.xlu0.b32.cont [11/16] 0.0, 128
        %902 = vxpose.xlu0.b32.cont [12/16] 0.0, 128
        %903 = vxpose.xlu0.b32.cont [13/16] 0.0, 128
        %904 = vxpose.xlu0.b32.cont [14/16] 0.0, 128
        %905 = vxpose.xlu0.b32.cont [15/16] 0.0, 128
        %906 = vxpose.xlu0.b32.end [16/16] 0.0, 128
        %v907 = vpop.trf.xlu0
        %v908 = vpop.trf.xlu0
        %v909 = vpop.trf.xlu0
        %v910 = vpop.trf.xlu0
        %v911 = vpop.trf.xlu0
        %v912 = vpop.trf.xlu0
        %v913 = vpop.trf.xlu0
        %v914 = vpop.trf.xlu0
        %v915 = vpop.trf.xlu0
        %v916 = vpop.trf.xlu0
        %v917 = vpop.trf.xlu0
        %v918 = vpop.trf.xlu0
        %v919 = vpop.trf.xlu0
        %v920 = vpop.trf.xlu0
        %v921 = vpop.trf.xlu0
        %v922 = vpop.trf.xlu0
        %923 = vxpose.xlu0.b32.start [1/16] %v791, 128
        %924 = vxpose.xlu0.b32.cont [2/16] 0.0, 128
        %925 = vxpose.xlu0.b32.cont [3/16] 0.0, 128
        %926 = vxpose.xlu0.b32.cont [4/16] 0.0, 128
        %927 = vxpose.xlu0.b32.cont [5/16] 0.0, 128
        %928 = vxpose.xlu0.b32.cont [6/16] 0.0, 128
        %929 = vxpose.xlu0.b32.cont [7/16] 0.0, 128
        %930 = vxpose.xlu0.b32.cont [8/16] 0.0, 128
        %931 = vxpose.xlu0.b32.cont [9/16] 0.0, 128
        %932 = vxpose.xlu0.b32.cont [10/16] 0.0, 128
        %933 = vxpose.xlu0.b32.cont [11/16] 0.0, 128
        %934 = vxpose.xlu0.b32.cont [12/16] 0.0, 128
        %935 = vxpose.xlu0.b32.cont [13/16] 0.0, 128
        %936 = vxpose.xlu0.b32.cont [14/16] 0.0, 128
        %937 = vxpose.xlu0.b32.cont [15/16] 0.0, 128
        %938 = vxpose.xlu0.b32.end [16/16] 0.0, 128
        %v939 = vpop.trf.xlu0
        %v940 = vpop.trf.xlu0
        %v941 = vpop.trf.xlu0
        %v942 = vpop.trf.xlu0
        %v943 = vpop.trf.xlu0
        %v944 = vpop.trf.xlu0
        %v945 = vpop.trf.xlu0
        %v946 = vpop.trf.xlu0
        %v947 = vpop.trf.xlu0
        %v948 = vpop.trf.xlu0
        %v949 = vpop.trf.xlu0
        %v950 = vpop.trf.xlu0
        %v951 = vpop.trf.xlu0
        %v952 = vpop.trf.xlu0
        %v953 = vpop.trf.xlu0
        %v954 = vpop.trf.xlu0
        %955 = vxpose.xlu0.b32.start [1/16] %v792, 128
        %956 = vxpose.xlu0.b32.cont [2/16] 0.0, 128
        %957 = vxpose.xlu0.b32.cont [3/16] 0.0, 128
        %958 = vxpose.xlu0.b32.cont [4/16] 0.0, 128
        %959 = vxpose.xlu0.b32.cont [5/16] 0.0, 128
        %960 = vxpose.xlu0.b32.cont [6/16] 0.0, 128
        %961 = vxpose.xlu0.b32.cont [7/16] 0.0, 128
        %962 = vxpose.xlu0.b32.cont [8/16] 0.0, 128
        %963 = vxpose.xlu0.b32.cont [9/16] 0.0, 128
        %964 = vxpose.xlu0.b32.cont [10/16] 0.0, 128
        %965 = vxpose.xlu0.b32.cont [11/16] 0.0, 128
        %966 = vxpose.xlu0.b32.cont [12/16] 0.0, 128
        %967 = vxpose.xlu0.b32.cont [13/16] 0.0, 128
        %968 = vxpose.xlu0.b32.cont [14/16] 0.0, 128
        %969 = vxpose.xlu0.b32.cont [15/16] 0.0, 128
        %970 = vxpose.xlu0.b32.end [16/16] 0.0, 128
        %v971 = vpop.trf.xlu0
        %v972 = vpop.trf.xlu0
        %v973 = vpop.trf.xlu0
        %v974 = vpop.trf.xlu0
        %v975 = vpop.trf.xlu0
        %v976 = vpop.trf.xlu0
        %v977 = vpop.trf.xlu0
        %v978 = vpop.trf.xlu0
        %v979 = vpop.trf.xlu0
        %v980 = vpop.trf.xlu0
        %v981 = vpop.trf.xlu0
        %v982 = vpop.trf.xlu0
        %v983 = vpop.trf.xlu0
        %v984 = vpop.trf.xlu0
        %v985 = vpop.trf.xlu0
        %v986 = vpop.trf.xlu0
        %987 = vxpose.xlu0.b32.start [1/16] %v793, 128
        %988 = vxpose.xlu0.b32.cont [2/16] 0.0, 128
        %989 = vxpose.xlu0.b32.cont [3/16] 0.0, 128
        %990 = vxpose.xlu0.b32.cont [4/16] 0.0, 128
        %991 = vxpose.xlu0.b32.cont [5/16] 0.0, 128
        %992 = vxpose.xlu0.b32.cont [6/16] 0.0, 128
        %993 = vxpose.xlu0.b32.cont [7/16] 0.0, 128
        %994 = vxpose.xlu0.b32.cont [8/16] 0.0, 128
        %995 = vxpose.xlu0.b32.cont [9/16] 0.0, 128
        %996 = vxpose.xlu0.b32.cont [10/16] 0.0, 128
        %997 = vxpose.xlu0.b32.cont [11/16] 0.0, 128
        %998 = vxpose.xlu0.b32.cont [12/16] 0.0, 128
        %999 = vxpose.xlu0.b32.cont [13/16] 0.0, 128
        %1000 = vxpose.xlu0.b32.cont [14/16] 0.0, 128
        %1001 = vxpose.xlu0.b32.cont [15/16] 0.0, 128
        %1002 = vxpose.xlu0.b32.end [16/16] 0.0, 128
        %v1003 = vpop.trf.xlu0
        %v1004 = vpop.trf.xlu0
        %v1005 = vpop.trf.xlu0
        %v1006 = vpop.trf.xlu0
        %v1007 = vpop.trf.xlu0
        %v1008 = vpop.trf.xlu0
        %v1009 = vpop.trf.xlu0
        %v1010 = vpop.trf.xlu0
        %v1011 = vpop.trf.xlu0
        %v1012 = vpop.trf.xlu0
        %v1013 = vpop.trf.xlu0
        %v1014 = vpop.trf.xlu0
        %v1015 = vpop.trf.xlu0
        %v1016 = vpop.trf.xlu0
        %v1017 = vpop.trf.xlu0
        %v1018 = vpop.trf.xlu0
        %1019 = vxpose.xlu0.b32.start [1/16] %v794, 128
        %1020 = vxpose.xlu0.b32.cont [2/16] 0.0, 128
        %1021 = vxpose.xlu0.b32.cont [3/16] 0.0, 128
        %1022 = vxpose.xlu0.b32.cont [4/16] 0.0, 128
        %1023 = vxpose.xlu0.b32.cont [5/16] 0.0, 128
        %1024 = vxpose.xlu0.b32.cont [6/16] 0.0, 128
        %1025 = vxpose.xlu0.b32.cont [7/16] 0.0, 128
        %1026 = vxpose.xlu0.b32.cont [8/16] 0.0, 128
        %1027 = vxpose.xlu0.b32.cont [9/16] 0.0, 128
        %1028 = vxpose.xlu0.b32.cont [10/16] 0.0, 128
        %1029 = vxpose.xlu0.b32.cont [11/16] 0.0, 128
        %1030 = vxpose.xlu0.b32.cont [12/16] 0.0, 128
        %1031 = vxpose.xlu0.b32.cont [13/16] 0.0, 128
        %1032 = vxpose.xlu0.b32.cont [14/16] 0.0, 128
        %1033 = vxpose.xlu0.b32.cont [15/16] 0.0, 128
        %1034 = vxpose.xlu0.b32.end [16/16] 0.0, 128
        %v1035 = vpop.trf.xlu0
        %v1036 = vpop.trf.xlu0
        %v1037 = vpop.trf.xlu0
        %v1038 = vpop.trf.xlu0
        %v1039 = vpop.trf.xlu0
        %v1040 = vpop.trf.xlu0
        %v1041 = vpop.trf.xlu0
        %v1042 = vpop.trf.xlu0
        %v1043 = vpop.trf.xlu0
        %v1044 = vpop.trf.xlu0
        %v1045 = vpop.trf.xlu0
        %v1046 = vpop.trf.xlu0
        %v1047 = vpop.trf.xlu0
        %v1048 = vpop.trf.xlu0
        %v1049 = vpop.trf.xlu0
        %v1050 = vpop.trf.xlu0
        %v1051 = vcombine.low %v811, %v875
        %v1053 = vunpack.c.l.s4 1983009808
        %v1054 = vunpack.c.0.s8 %v1053
        %v1055 = vlaneseq
        %v1056 = vshrl.u32 %v1055, 7
        %v1057 = vsub.s32 %v1054, %v1056
        %v1058 = vrot.slane %v1051, %v1057
        %v1059 = vcombine.low %v843, %v907
        %v1061 = vunpack.c.l.s4 1983009808
        %v1062 = vunpack.c.0.s8 %v1061
        %v1063 = vlaneseq
        %v1064 = vshrl.u32 %v1063, 7
        %v1065 = vsub.s32 %v1062, %v1064
        %v1066 = vrot.slane %v1059, %v1065
        %v1067 = vcombine.low %v939, %v1003
        %v1069 = vunpack.c.l.s4 1983009808
        %v1070 = vunpack.c.0.s8 %v1069
        %v1071 = vlaneseq
        %v1072 = vshrl.u32 %v1071, 7
        %v1073 = vsub.s32 %v1070, %v1072
        %v1074 = vrot.slane %v1067, %v1073
        %v1075 = vcombine.low %v971, %v1035
        %v1077 = vunpack.c.l.s4 1983009808
        %v1078 = vunpack.c.0.s8 %v1077
        %v1079 = vlaneseq
        %v1080 = vshrl.u32 %v1079, 7
        %v1081 = vsub.s32 %v1078, %v1080
        %v1082 = vrot.slane %v1075, %v1081
        %v1083 = vcombine.low %v1058, %v1066
        %v1085 = vunpack.c.l.s4 1934713408
        %v1086 = vunpack.c.0.s8 %v1085
        %v1087 = vlaneseq
        %v1088 = vshrl.u32 %v1087, 7
        %v1089 = vsub.s32 %v1086, %v1088
        %v1090 = vrot.slane %v1083, %v1089
        %v1091 = vcombine.low %v1074, %v1082
        %v1093 = vunpack.c.l.s4 1934713408
        %v1094 = vunpack.c.0.s8 %v1093
        %v1095 = vlaneseq
        %v1096 = vshrl.u32 %v1095, 7
        %v1097 = vsub.s32 %v1094, %v1096
        %v1098 = vrot.slane %v1091, %v1097
        %v1099 = vcombine.low %v1090, %v1098
        %v1100 = vcombine.high %v1090, %v1098
        %s1101 = scalar_lea.vmem %s165, 16 [#allocation5]
        %1102 = vst.msk [vmem:[%s1101] sm:$0xff] %vm632, %v1099
        %1103 = vst.msk [vmem:[%s1101 + $0x8] sm:$0xff] %vm632, %v1100
        %s1104 = sand.u32 %s79, 1
        %s1105 = scalar_lea.sflag [#allocation4], %s1104
        %s1106 = sand.u32 %s79, 1
        %s1107 = smul.addr %s1106, 32
        %s1108 = scalar_lea.vmem [#allocation5], %s1107
        // Predicated region
        $region29: #{tpu_custom_call.1} parent=23 // pred_check
          %p1109 = pneg %p89
        $region30: #{tpu_custom_call.1} parent=23 // pred_check_branch
          %1111 = sbr.rel (%p1109) target = $region32
        $region31: #{tpu_custom_call.1} parent=23 // pred_region
          %s1113 = ssub.s32 512, 512
          %1114 = vsyncadd %s1105, %s1113
          %s1115 = smul.addr %s24, 4
          %s1116 = sadd.s32 %s25, %s1115
          %s1117 = smul.addr %s23, 16
          %s1118 = sadd.s32 %s1116, %s1117
          %s1119 = smul.addr %s1118, 128
          %s1120 = scalar_lea.hbm %s1, %s1119
          %s1121 = sshll.u32 %s1108, 4
          %s1122 = int_to_ptr.vmem [resolvable:$true] %s1121
          %1127 = dma.vmem_to_hbm [thread:$0]  %s1122, 512, %s1120, %s1105, 128, 128, 8
        $region32: #{tpu_custom_call.1} parent=23 // pred_fallthru
          _
      $region24: #{tpu_custom_call.1} parent=5 // pred_fallthru
        _
      %p1128 = scmp.le.s32.totalorder 2, %s13
      // Predicated region
      $region33: #{tpu_custom_call.1} parent=5 // pred_check
        %p1129 = pneg %p1128
      $region34: #{tpu_custom_call.1} parent=5 // pred_check_branch
        %1131 = sbr.rel (%p1129) target = $region36
      $region35: #{tpu_custom_call.1} parent=5 // pred_region
        %s1132 = ssub.s32 %s13, 2
        // Predicated region
        $region37: #{tpu_custom_call.1} parent=35 // pred_check
          %p1133 = pneg %p95
        $region38: #{tpu_custom_call.1} parent=35 // pred_check_branch
          %1135 = sbr.rel (%p1133) target = $region40
        $region39: #{tpu_custom_call.1} parent=35 // pred_region
          %s1136 = sand.u32 %s80, 1
          %s1137 = scalar_lea.sflag [#allocation4], %s1136
          %s1138 = sand.u32 %s80, 1
          %s1139 = smul.addr %s1138, 32
          %s1140 = scalar_lea.vmem [#allocation5], %s1139
          %1141 = dma.done %s1137, 512
        $region40: #{tpu_custom_call.1} parent=35 // pred_fallthru
          _
      $region36: #{tpu_custom_call.1} parent=5 // pred_fallthru
        _
    $region6: #{tpu_custom_call.1} parent=1 // loop_footer
      %s17 = sadd.s32 1, %s13
    $region7: #{tpu_custom_call.1} parent=1 // loop_footer_branch
      %12 = sbr.rel target = $region3
    $region8: #{tpu_custom_call.1} parent=1 // loop_exit
      _
    %1142 = vsyncpa [#allocation3], 1
    %s1143 = scalar_lea.sflag [#allocation3], 1
    %1144 = vsyncpa %s1143, 1
    %1145 = vsyncpa [#allocation4], 1
    %s1146 = scalar_lea.sflag [#allocation4], 1
    %1147 = vsyncpa %s1146, 1

</llo_original>
